<compile_context>
chip_gen: v7x
topology: tpu7x:2x2x1
jax: 0.10.0
libtpu: 0.0.40
codegen_flags: <defaults>
</compile_context>

<pallas_src>
import functools

import jax
import jax.numpy as jnp
from jax import lax
from jax.experimental import pallas as pl
from jax.experimental.pallas import tpu as pltpu

_LANES = 128        # vreg lane width
_ACC_ROWS = 8       # vreg sublane count; shape of each per-core accumulator
_FOLD_ROWS = 256    # rows per in-kernel fold chunk (bounds live vregs)
_TILE_ROWS = 4096   # rows per grid step (2 MiB per input tile, 12 MiB total)


def _cdiv(a, b):
    return -(-a // b)


def _round_up(x, m):
    return _cdiv(x, m) * m


def _num_tensorcores():
    """2 TensorCores per device on v4 megacore / v7x, else 1 (v5e/v6e)."""
    try:
        kind = jax.devices()[0].device_kind.lower()
    except Exception:
        return 1
    return 2 if ("v7" in kind or "v4" in kind) else 1


def _focal_partial_kernel(pred_ref, true_ref, da_ref, acc_ref, *, n_fold):
    # acc_ref is this core's resident (8,128) output block -> vector
    # accumulator across the whole reduction axis (grid axis 1).
    @pl.when(pl.program_id(1) == 0)
    def _():
        acc_ref[...] = jnp.zeros_like(acc_ref)

    def fold(j, carry):
        r0 = pl.multiple_of(j * _FOLD_ROWS, _FOLD_ROWS)
        sl = pl.ds(r0, _FOLD_ROWS)

        p = jnp.clip(pred_ref[sl, :].astype(jnp.float32), 0.001, 1.0 - 0.001)
        t = true_ref[sl, :].astype(jnp.float32)
        da = da_ref[sl, :].astype(jnp.float32)

        # Single transcendental per element (EUP has one slot on all chips).
        is_pos = t == 1.0
        logv = jnp.log(jnp.where(is_pos, p, 1.0 - p))
        # (1 - t)^4 as a guaranteed 2-mul chain (keep the EUP slot for log).
        omt = 1.0 - t
        w = jnp.where(is_pos, 1.0, jnp.square(jnp.square(omt)))
        diff = p - t
        loss = da * (diff * diff) * (w * logv)

        # Fold (FOLD_ROWS,128) -> (8,128) with cross-vreg VPU adds only.
        acc_ref[...] += jnp.sum(
            loss.reshape(_FOLD_ROWS // _ACC_ROWS, _ACC_ROWS, _LANES), axis=0)
        return carry

    lax.fori_loop(0, n_fold, fold, 0)


@jax.jit
def pixel_focal_loss(pred_heatmap, true_heatmap, da_area):
    """-mean(da * (p - t)^2 * (mask*log(p) + (1-mask)*(1-t)^4*log(1-p)))."""
    assert pred_heatmap.shape == true_heatmap.shape == da_area.shape
    n_elems = pred_heatmap.size
    num_cores = _num_tensorcores()

    # Lane-dense slab geometry.  rows is padded (with zeros) to exactly
    # num_cores * blocks_per_core * tile_rows, so every DMA block is a real,
    # fully-in-bounds block and padded elements contribute exactly 0
    # (da_area padding is 0; the elementwise math stays finite on pads).
    rows_min = _cdiv(n_elems, _LANES)
    tile_rows = min(_TILE_ROWS,
                    _round_up(_cdiv(rows_min, num_cores), _FOLD_ROWS))
    blocks_per_core = _cdiv(rows_min, tile_rows * num_cores)
    rows = num_cores * blocks_per_core * tile_rows
    pad = rows * _LANES - n_elems
    n_fold = tile_rows // _FOLD_ROWS

    def _slab(x):
        x = x.reshape(-1)
        if x.dtype not in (jnp.float32, jnp.bfloat16):
            x = x.astype(jnp.float32)
        if pad:
            x = jnp.pad(x, (0, pad))
        return x.reshape(rows, _LANES)

    p2d, t2d, d2d = _slab(pred_heatmap), _slab(true_heatmap), _slab(da_area)

    def in_map(c, i):
        return (c * blocks_per_core + i, 0)

    in_specs = [pl.BlockSpec((tile_rows, _LANES), in_map) for _ in range(3)]
    out_spec = pl.BlockSpec((_ACC_ROWS, _LANES), lambda c, i: (c, 0))

    kernel = functools.partial(_focal_partial_kernel, n_fold=n_fold)

    partials = pl.pallas_call(
        kernel,
        out_shape=jax.ShapeDtypeStruct((num_cores * _ACC_ROWS, _LANES),
                                       jnp.float32),
        grid_spec=pltpu.PrefetchScalarGridSpec(
            num_scalar_prefetch=0,
            grid=(num_cores, blocks_per_core),
            in_specs=in_specs,
            out_specs=out_spec,
        ),
        compiler_params=pltpu.CompilerParams(
            dimension_semantics=("parallel", "arbitrary")),
    )(p2d, t2d, d2d)

    # Final cross-lane reduce, mean over the ORIGINAL element count, negate.
    return -(jnp.sum(partials) / jnp.float32(n_elems))


def _reference(pred, true, da):
    mask = (true == 1.0).astype(jnp.float32)
    p = jnp.clip(pred, 0.001, 1.0 - 0.001)
    term = mask * jnp.log(p) + (1.0 - mask) * ((1.0 - true) ** 4 * jnp.log(1.0 - p))
    return -jnp.mean(da * (p - true) ** 2 * term)


if __name__ == "__main__":
    key = jax.random.PRNGKey(0)
    k1, k2, k3 = jax.random.split(key, 3)

    B, C, H, W = 2, 4, 16, 16  # NCHW, matching the PyTorch convention
    pred = jax.random.uniform(k1, (B, C, H, W), jnp.float32, 0.0, 1.0)
    # true heatmap: mostly gaussian-ish values in [0,1), with some exact 1.0 peaks
    true = jax.random.uniform(k2, (B, C, H, W), jnp.float32, 0.0, 1.0)
    peaks = jax.random.bernoulli(k3, 0.05, (B, C, H, W))
    true = jnp.where(peaks, 1.0, true * 0.98)
    da = jax.random.uniform(jax.random.PRNGKey(7), (B, C, H, W), jnp.float32, 0.0, 1.0)

    out = pixel_focal_loss(pred, true, da)
    out = jax.block_until_ready(out)

    ref = _reference(pred, true, da)
    assert jnp.allclose(out, ref, rtol=1e-5, atol=1e-6), (out, ref)
    print("KERNEL_OK")
</pallas_src>

<mosaic_0001>
module attributes {stable_mosaic.version = 11 : i64} {
  func.func @_focal_partial_kernel(%arg0: i32, %arg1: i32, %arg2: memref<256x128xf32, #tpu.memory_space<vmem>>, %arg3: memref<256x128xf32, #tpu.memory_space<vmem>>, %arg4: memref<256x128xf32, #tpu.memory_space<vmem>>, %arg5: memref<8x128xf32, #tpu.memory_space<vmem>>) attributes {dimension_semantics = [#tpu.dimension_semantics<parallel>, #tpu.dimension_semantics<arbitrary>], iteration_bounds = array<i64: 1, 1>, scalar_prefetch = 0 : i64, scratch_operands = 0 : i64, tpu.core_type = #tpu.core_type<tc>, window_params = [{transform_indices = @transform_0, window_bounds = array<i64: 256, 128>}, {transform_indices = @transform_1, window_bounds = array<i64: 256, 128>}, {transform_indices = @transform_2, window_bounds = array<i64: 256, 128>}, {transform_indices = @transform_3, window_bounds = array<i64: 8, 128>}]} {
    %c0_i32 = arith.constant 0 : i32
    %0 = arith.cmpi eq, %arg1, %c0_i32 : i32
    %1 = arith.extui %0 : i1 to i32
    %c0_i32_0 = arith.constant 0 : i32
    %2 = arith.cmpi ne, %1, %c0_i32_0 : i32
    scf.if %2 {
      %cst_14 = arith.constant 0.000000e+00 : f32
      %37 = vector.broadcast %cst_14 : f32 to vector<8x128xf32>
      %c0_15 = arith.constant 0 : index
      %c0_16 = arith.constant 0 : index
      %38 = vector.load %arg5[%c0_15, %c0_16] : memref<8x128xf32, #tpu.memory_space<vmem>>, vector<8x128xf32>
      tpu.vector_store %arg5[%c0_15, %c0_16], %37 {strides = array<i32>} : memref<8x128xf32, #tpu.memory_space<vmem>>, vector<8x128xf32>,
    } else {
    }
    %c0_i32_1 = arith.constant 0 : i32
    %c256_i32 = arith.constant 256 : i32
    %3 = arith.muli %c0_i32_1, %c256_i32 : i32
    %4 = tpu.assume_multiple %3, 256 : i32
    %5 = arith.index_cast %4 : i32 to index
    %c0 = arith.constant 0 : index
    %6 = vector.load %arg2[%5, %c0] : memref<256x128xf32, #tpu.memory_space<vmem>>, vector<256x128xf32>
    %cst = arith.constant 1.000000e-03 : f32
    %cst_2 = arith.constant 9.990000e-01 : f32
    %7 = vector.broadcast %cst : f32 to vector<256x128xf32>
    %8 = arith.maximumf %7, %6 : vector<256x128xf32>
    %9 = vector.broadcast %cst_2 : f32 to vector<256x128xf32>
    %10 = arith.minimumf %9, %8 : vector<256x128xf32>
    %11 = arith.index_cast %4 : i32 to index
    %c0_3 = arith.constant 0 : index
    %12 = vector.load %arg3[%11, %c0_3] : memref<256x128xf32, #tpu.memory_space<vmem>>, vector<256x128xf32>
    %13 = arith.index_cast %4 : i32 to index
    %c0_4 = arith.constant 0 : index
    %14 = vector.load %arg4[%13, %c0_4] : memref<256x128xf32, #tpu.memory_space<vmem>>, vector<256x128xf32>
    %cst_5 = arith.constant 1.000000e+00 : f32
    %15 = vector.broadcast %cst_5 : f32 to vector<256x128xf32>
    %16 = arith.cmpf oeq, %12, %15 : vector<256x128xf32>
    %cst_6 = arith.constant 1.000000e+00 : f32
    %17 = vector.broadcast %cst_6 : f32 to vector<256x128xf32>
    %18 = arith.subf %17, %10 : vector<256x128xf32>
    %19 = arith.select %16, %10, %18 : vector<256x128xi1>, vector<256x128xf32>
    %20 = math.log %19 : vector<256x128xf32>
    %cst_7 = arith.constant 1.000000e+00 : f32
    %21 = vector.broadcast %cst_7 : f32 to vector<256x128xf32>
    %22 = arith.subf %21, %12 : vector<256x128xf32>
    %23 = arith.mulf %22, %22 : vector<256x128xf32>
    %24 = arith.mulf %23, %23 : vector<256x128xf32>
    %cst_8 = arith.constant 1.000000e+00 : f32
    %25 = vector.broadcast %cst_8 : f32 to vector<256x128xf32>
    %26 = arith.select %16, %25, %24 : vector<256x128xi1>, vector<256x128xf32>
    %27 = arith.subf %10, %12 : vector<256x128xf32>
    %28 = arith.mulf %27, %27 : vector<256x128xf32>
    %29 = arith.mulf %14, %28 : vector<256x128xf32>
    %30 = arith.mulf %26, %20 : vector<256x128xf32>
    %31 = arith.mulf %29, %30 : vector<256x128xf32>
    %c0_9 = arith.constant 0 : index
    %c0_10 = arith.constant 0 : index
    %32 = vector.load %arg5[%c0_9, %c0_10] : memref<8x128xf32, #tpu.memory_space<vmem>>, vector<8x128xf32>
    %33 = vector.shape_cast %31 : vector<256x128xf32> to vector<32x8x128xf32>
    %cst_11 = arith.constant dense<0.000000e+00> : vector<8x128xf32>
    %34 = vector.multi_reduction <add>, %33, %cst_11 [0] : vector<32x8x128xf32> to vector<8x128xf32>
    %35 = arith.addf %32, %34 : vector<8x128xf32>
    %c0_12 = arith.constant 0 : index
    %c0_13 = arith.constant 0 : index
    %36 = vector.load %arg5[%c0_12, %c0_13] : memref<8x128xf32, #tpu.memory_space<vmem>>, vector<8x128xf32>
    tpu.vector_store %arg5[%c0_12, %c0_13], %35 {strides = array<i32>} : memref<8x128xf32, #tpu.memory_space<vmem>>, vector<8x128xf32>,
    %c1_i32 = arith.constant 1 : i32
    return
  }
  func.func @transform_0(%arg0: i32, %arg1: i32) -> (i32, i32) {
    %c1_i32 = arith.constant 1 : i32
    %0 = arith.muli %arg0, %c1_i32 : i32
    %1 = arith.addi %0, %arg1 : i32
    %c0_i32 = arith.constant 0 : i32
    %c0_i32_0 = arith.constant 0 : i32
    return %1, %c0_i32 : i32, i32
  }
  func.func @transform_1(%arg0: i32, %arg1: i32) -> (i32, i32) {
    %c1_i32 = arith.constant 1 : i32
    %0 = arith.muli %arg0, %c1_i32 : i32
    %1 = arith.addi %0, %arg1 : i32
    %c0_i32 = arith.constant 0 : i32
    %c0_i32_0 = arith.constant 0 : i32
    return %1, %c0_i32 : i32, i32
  }
  func.func @transform_2(%arg0: i32, %arg1: i32) -> (i32, i32) {
    %c1_i32 = arith.constant 1 : i32
    %0 = arith.muli %arg0, %c1_i32 : i32
    %1 = arith.addi %0, %arg1 : i32
    %c0_i32 = arith.constant 0 : i32
    %c0_i32_0 = arith.constant 0 : i32
    return %1, %c0_i32 : i32, i32
  }
  func.func @transform_3(%arg0: i32, %arg1: i32) -> (i32, i32) {
    %c0_i32 = arith.constant 0 : i32
    %c0_i32_0 = arith.constant 0 : i32
    return %arg0, %c0_i32 : i32, i32
  }
}

</mosaic_0001>

<llo_original>
// kernel: pixel_focal_loss.1
$region0: #{pixel_focal_loss.1}
  #allocation0 [shape = 'u32[]', space=smem, size = 0x4, offset = 0x4, fixed_abs, tag = 'smem constant byte address 0x4 - core index']
  #allocation1 [shape = 'u32[144,128]{1,0:T(1,128)}', space=vmem, size = 0x12000, scoped, tag = 'internal scratch']
  %s0 = inlined_call_operand.vmem [shape: f32[256,128], index: 0, kind: input, shape index: {}]
  %s1 = inlined_call_operand.vmem [shape: f32[256,128], index: 1, kind: input, shape index: {}]
  %s2 = inlined_call_operand.vmem [shape: f32[256,128], index: 2, kind: input, shape index: {}]
  %s3 = inlined_call_operand.vmem [shape: f32[8,128], index: 3, kind: output, shape index: {}]
  %s4 = sld [smem:[#allocation0]]
  $region26: #{pixel_focal_loss.1} parent=0
    _
  %s6 = ssub.s32 1, %s4
  %s7 = scalar_select 0, %s6, %s4
  // Predicated region
  $region2: #{pixel_focal_loss.1} parent=0 // pred_check
    _
  $region3: #{pixel_focal_loss.1} parent=0 // pred_check_branch
    %9 = sbr.rel (0) target = $region5
  $region4: #{pixel_focal_loss.1} parent=0 // pred_region
    %s10 = sadd.s32 0, 0
    %s11 = smul.u32 32, %s10
    %p12 = scmp.lt.s32.totalorder %s11, 31
    %s13 = scalar_select %p12, %s11, 31
    %s14 = smul.addr %s13, 8
    %s15 = scalar_lea.vmem %s0, %s14
    %s16 = sadd.s32 0, 0
    %s17 = smul.u32 32, %s16
  $region5: #{pixel_focal_loss.1} parent=0 // pred_fallthru
    _
  // Predicated region
  $region6: #{pixel_focal_loss.1} parent=0 // pred_check
    _
  $region7: #{pixel_focal_loss.1} parent=0 // pred_check_branch
    %19 = sbr.rel (0) target = $region9
  $region8: #{pixel_focal_loss.1} parent=0 // pred_region
    %s20 = sadd.s32 0, 0
    %s21 = smul.u32 32, %s20
    %p22 = scmp.lt.s32.totalorder %s21, 31
    %s23 = scalar_select %p22, %s21, 31
    %s24 = smul.addr %s23, 8
    %s25 = scalar_lea.vmem %s1, %s24
    %s26 = sadd.s32 0, 0
    %s27 = smul.u32 32, %s26
  $region9: #{pixel_focal_loss.1} parent=0 // pred_fallthru
    _
  // Predicated region
  $region10: #{pixel_focal_loss.1} parent=0 // pred_check
    _
  $region11: #{pixel_focal_loss.1} parent=0 // pred_check_branch
    %29 = sbr.rel (0) target = $region13
  $region12: #{pixel_focal_loss.1} parent=0 // pred_region
    %s30 = sadd.s32 0, 0
    %s31 = smul.u32 32, %s30
    %p32 = scmp.lt.s32.totalorder %s31, 31
    %s33 = scalar_select %p32, %s31, 31
    %s34 = smul.addr %s33, 8
    %s35 = scalar_lea.vmem %s2, %s34
    %s36 = sadd.s32 0, 0
    %s37 = smul.u32 32, %s36
  $region13: #{pixel_focal_loss.1} parent=0 // pred_fallthru
    _
  %s38 = sadd.s32 0, 0
  %s39 = smul.u32 32, %s38
  %p40 = scmp.lt.s32.totalorder %s39, 31
  %s41 = scalar_select %p40, %s39, 31
  %s42 = smul.addr %s41, 8
  %s43 = scalar_lea.vmem %s0, %s42
  %s44 = sadd.s32 0, 0
  %s45 = smul.u32 32, %s44
  %p46 = scmp.lt.s32.totalorder %s45, 31
  %s47 = scalar_select %p46, %s45, 31
  %s48 = smul.addr %s47, 8
  %s49 = scalar_lea.vmem %s1, %s48
  %s50 = sadd.s32 0, 0
  %s51 = smul.u32 32, %s50
  %p52 = scmp.lt.s32.totalorder %s51, 31
  %s53 = scalar_select %p52, %s51, 31
  %s54 = smul.addr %s53, 8
  %s55 = scalar_lea.vmem %s2, %s54
  %s56 = sadd.s32 0, 0
  %s57 = smul.u32 32, %s56
  %p58 = scmp.lt.s32.totalorder %s57, 31
  %s59 = scalar_select %p58, %s57, 31
  %s60 = smul.addr %s59, 8
  %s61 = scalar_lea.vmem %s0, %s60
  %s62 = sadd.s32 0, 0
  %s63 = smul.u32 32, %s62
  %s64 = sadd.s32 0, 0
  %s65 = smul.u32 32, %s64
  %p66 = scmp.lt.s32.totalorder %s65, 31
  %s67 = scalar_select %p66, %s65, 31
  %s68 = smul.addr %s67, 8
  %s69 = scalar_lea.vmem %s1, %s68
  %s70 = sadd.s32 0, 0
  %s71 = smul.u32 32, %s70
  %s72 = sadd.s32 0, 0
  %s73 = smul.u32 32, %s72
  %p74 = scmp.lt.s32.totalorder %s73, 31
  %s75 = scalar_select %p74, %s73, 31
  %s76 = smul.addr %s75, 8
  %s77 = scalar_lea.vmem %s2, %s76
  %s78 = sadd.s32 0, 0
  %s79 = smul.u32 32, %s78
  %p80 = scmp.eq.s32.totalorder 0, 0
  // Predicated region
  $region14: #{pixel_focal_loss.1} parent=0 // pred_check
    %p81 = pneg %p80
  $region15: #{pixel_focal_loss.1} parent=0 // pred_check_branch
    %83 = sbr.rel (%p81) target = $region17
  $region16: #{pixel_focal_loss.1} parent=0 // pred_region
    %84 = vst [vmem:[%s3] sm:$0xff] 0.0
  $region17: #{pixel_focal_loss.1} parent=0 // pred_fallthru
    _
  %v85 = vld [vmem:[%s61] sm:$0xff]
  %v86 = vld [vmem:[%s61 + $0x8] sm:$0xff]
  %v87 = vld [vmem:[%s61 + $0x10] sm:$0xff]
  %v88 = vld [vmem:[%s61 + $0x18] sm:$0xff]
  %v89 = vld [vmem:[%s61 + $0x20] sm:$0xff]
  %v90 = vld [vmem:[%s61 + $0x28] sm:$0xff]
  %v91 = vld [vmem:[%s61 + $0x30] sm:$0xff]
  %v92 = vld [vmem:[%s61 + $0x38] sm:$0xff]
  %v93 = vld [vmem:[%s61 + $0x40] sm:$0xff]
  %v94 = vld [vmem:[%s61 + $0x48] sm:$0xff]
  %v95 = vld [vmem:[%s61 + $0x50] sm:$0xff]
  %v96 = vld [vmem:[%s61 + $0x58] sm:$0xff]
  %v97 = vld [vmem:[%s61 + $0x60] sm:$0xff]
  %v98 = vld [vmem:[%s61 + $0x68] sm:$0xff]
  %v99 = vld [vmem:[%s61 + $0x70] sm:$0xff]
  %v100 = vld [vmem:[%s61 + $0x78] sm:$0xff]
  %v101 = vld [vmem:[%s61 + $0x80] sm:$0xff]
  %v102 = vld [vmem:[%s61 + $0x88] sm:$0xff]
  %v103 = vld [vmem:[%s61 + $0x90] sm:$0xff]
  %v104 = vld [vmem:[%s61 + $0x98] sm:$0xff]
  %v105 = vld [vmem:[%s61 + $0xa0] sm:$0xff]
  %v106 = vld [vmem:[%s61 + $0xa8] sm:$0xff]
  %v107 = vld [vmem:[%s61 + $0xb0] sm:$0xff]
  %v108 = vld [vmem:[%s61 + $0xb8] sm:$0xff]
  %v109 = vld [vmem:[%s61 + $0xc0] sm:$0xff]
  %v110 = vld [vmem:[%s61 + $0xc8] sm:$0xff]
  %v111 = vld [vmem:[%s61 + $0xd0] sm:$0xff]
  %v112 = vld [vmem:[%s61 + $0xd8] sm:$0xff]
  %v113 = vld [vmem:[%s61 + $0xe0] sm:$0xff]
  %v114 = vld [vmem:[%s61 + $0xe8] sm:$0xff]
  %v115 = vld [vmem:[%s61 + $0xf0] sm:$0xff]
  %v116 = vld [vmem:[%s61 + $0xf8] sm:$0xff]
  %v117 = vmax.f32 %v85, 0.001
  %v118 = vmax.f32 %v86, 0.001
  %v119 = vmax.f32 %v87, 0.001
  %v120 = vmax.f32 %v88, 0.001
  %v121 = vmax.f32 %v89, 0.001
  %v122 = vmax.f32 %v90, 0.001
  %v123 = vmax.f32 %v91, 0.001
  %v124 = vmax.f32 %v92, 0.001
  %v125 = vmax.f32 %v93, 0.001
  %v126 = vmax.f32 %v94, 0.001
  %v127 = vmax.f32 %v95, 0.001
  %v128 = vmax.f32 %v96, 0.001
  %v129 = vmax.f32 %v97, 0.001
  %v130 = vmax.f32 %v98, 0.001
  %v131 = vmax.f32 %v99, 0.001
  %v132 = vmax.f32 %v100, 0.001
  %v133 = vmax.f32 %v101, 0.001
  %v134 = vmax.f32 %v102, 0.001
  %v135 = vmax.f32 %v103, 0.001
  %v136 = vmax.f32 %v104, 0.001
  %v137 = vmax.f32 %v105, 0.001
  %v138 = vmax.f32 %v106, 0.001
  %v139 = vmax.f32 %v107, 0.001
  %v140 = vmax.f32 %v108, 0.001
  %v141 = vmax.f32 %v109, 0.001
  %v142 = vmax.f32 %v110, 0.001
  %v143 = vmax.f32 %v111, 0.001
  %v144 = vmax.f32 %v112, 0.001
  %v145 = vmax.f32 %v113, 0.001
  %v146 = vmax.f32 %v114, 0.001
  %v147 = vmax.f32 %v115, 0.001
  %v148 = vmax.f32 %v116, 0.001
  %v149 = vmin.f32 %v117, 0.999
  %v150 = vmin.f32 %v118, 0.999
  %v151 = vmin.f32 %v119, 0.999
  %v152 = vmin.f32 %v120, 0.999
  %v153 = vmin.f32 %v121, 0.999
  %v154 = vmin.f32 %v122, 0.999
  %v155 = vmin.f32 %v123, 0.999
  %v156 = vmin.f32 %v124, 0.999
  %v157 = vmin.f32 %v125, 0.999
  %v158 = vmin.f32 %v126, 0.999
  %v159 = vmin.f32 %v127, 0.999
  %v160 = vmin.f32 %v128, 0.999
  %v161 = vmin.f32 %v129, 0.999
  %v162 = vmin.f32 %v130, 0.999
  %v163 = vmin.f32 %v131, 0.999
  %v164 = vmin.f32 %v132, 0.999
  %v165 = vmin.f32 %v133, 0.999
  %v166 = vmin.f32 %v134, 0.999
  %v167 = vmin.f32 %v135, 0.999
  %v168 = vmin.f32 %v136, 0.999
  %v169 = vmin.f32 %v137, 0.999
  %v170 = vmin.f32 %v138, 0.999
  %v171 = vmin.f32 %v139, 0.999
  %v172 = vmin.f32 %v140, 0.999
  %v173 = vmin.f32 %v141, 0.999
  %v174 = vmin.f32 %v142, 0.999
  %v175 = vmin.f32 %v143, 0.999
  %v176 = vmin.f32 %v144, 0.999
  %v177 = vmin.f32 %v145, 0.999
  %v178 = vmin.f32 %v146, 0.999
  %v179 = vmin.f32 %v147, 0.999
  %v180 = vmin.f32 %v148, 0.999
  %v181 = vld [vmem:[%s69] sm:$0xff]
  %v182 = vld [vmem:[%s69 + $0x8] sm:$0xff]
  %v183 = vld [vmem:[%s69 + $0x10] sm:$0xff]
  %v184 = vld [vmem:[%s69 + $0x18] sm:$0xff]
  %v185 = vld [vmem:[%s69 + $0x20] sm:$0xff]
  %v186 = vld [vmem:[%s69 + $0x28] sm:$0xff]
  %v187 = vld [vmem:[%s69 + $0x30] sm:$0xff]
  %v188 = vld [vmem:[%s69 + $0x38] sm:$0xff]
  %v189 = vld [vmem:[%s69 + $0x40] sm:$0xff]
  %v190 = vld [vmem:[%s69 + $0x48] sm:$0xff]
  %v191 = vld [vmem:[%s69 + $0x50] sm:$0xff]
  %v192 = vld [vmem:[%s69 + $0x58] sm:$0xff]
  %v193 = vld [vmem:[%s69 + $0x60] sm:$0xff]
  %v194 = vld [vmem:[%s69 + $0x68] sm:$0xff]
  %v195 = vld [vmem:[%s69 + $0x70] sm:$0xff]
  %v196 = vld [vmem:[%s69 + $0x78] sm:$0xff]
  %v197 = vld [vmem:[%s69 + $0x80] sm:$0xff]
  %v198 = vld [vmem:[%s69 + $0x88] sm:$0xff]
  %v199 = vld [vmem:[%s69 + $0x90] sm:$0xff]
  %v200 = vld [vmem:[%s69 + $0x98] sm:$0xff]
  %v201 = vld [vmem:[%s69 + $0xa0] sm:$0xff]
  %v202 = vld [vmem:[%s69 + $0xa8] sm:$0xff]
  %v203 = vld [vmem:[%s69 + $0xb0] sm:$0xff]
  %v204 = vld [vmem:[%s69 + $0xb8] sm:$0xff]
  %v205 = vld [vmem:[%s69 + $0xc0] sm:$0xff]
  %v206 = vld [vmem:[%s69 + $0xc8] sm:$0xff]
  %v207 = vld [vmem:[%s69 + $0xd0] sm:$0xff]
  %v208 = vld [vmem:[%s69 + $0xd8] sm:$0xff]
  %v209 = vld [vmem:[%s69 + $0xe0] sm:$0xff]
  %v210 = vld [vmem:[%s69 + $0xe8] sm:$0xff]
  %v211 = vld [vmem:[%s69 + $0xf0] sm:$0xff]
  %v212 = vld [vmem:[%s69 + $0xf8] sm:$0xff]
  %v213 = vld [vmem:[%s77] sm:$0xff]
  %v214 = vld [vmem:[%s77 + $0x8] sm:$0xff]
  %v215 = vld [vmem:[%s77 + $0x10] sm:$0xff]
  %v216 = vld [vmem:[%s77 + $0x18] sm:$0xff]
  %v217 = vld [vmem:[%s77 + $0x20] sm:$0xff]
  %v218 = vld [vmem:[%s77 + $0x28] sm:$0xff]
  %v219 = vld [vmem:[%s77 + $0x30] sm:$0xff]
  %v220 = vld [vmem:[%s77 + $0x38] sm:$0xff]
  %v221 = vld [vmem:[%s77 + $0x40] sm:$0xff]
  %v222 = vld [vmem:[%s77 + $0x48] sm:$0xff]
  %v223 = vld [vmem:[%s77 + $0x50] sm:$0xff]
  %v224 = vld [vmem:[%s77 + $0x58] sm:$0xff]
  %v225 = vld [vmem:[%s77 + $0x60] sm:$0xff]
  %v226 = vld [vmem:[%s77 + $0x68] sm:$0xff]
  %v227 = vld [vmem:[%s77 + $0x70] sm:$0xff]
  %v228 = vld [vmem:[%s77 + $0x78] sm:$0xff]
  %v229 = vld [vmem:[%s77 + $0x80] sm:$0xff]
  %v230 = vld [vmem:[%s77 + $0x88] sm:$0xff]
  %v231 = vld [vmem:[%s77 + $0x90] sm:$0xff]
  %v232 = vld [vmem:[%s77 + $0x98] sm:$0xff]
  %v233 = vld [vmem:[%s77 + $0xa0] sm:$0xff]
  %v234 = vld [vmem:[%s77 + $0xa8] sm:$0xff]
  %v235 = vld [vmem:[%s77 + $0xb0] sm:$0xff]
  %v236 = vld [vmem:[%s77 + $0xb8] sm:$0xff]
  %v237 = vld [vmem:[%s77 + $0xc0] sm:$0xff]
  %v238 = vld [vmem:[%s77 + $0xc8] sm:$0xff]
  %v239 = vld [vmem:[%s77 + $0xd0] sm:$0xff]
  %v240 = vld [vmem:[%s77 + $0xd8] sm:$0xff]
  %v241 = vld [vmem:[%s77 + $0xe0] sm:$0xff]
  %v242 = vld [vmem:[%s77 + $0xe8] sm:$0xff]
  %v243 = vld [vmem:[%s77 + $0xf0] sm:$0xff]
  %v244 = vld [vmem:[%s77 + $0xf8] sm:$0xff]
  %vm245 = vcmp.eq.f32.partialorder %v181, 1.0
  %vm246 = vcmp.eq.f32.partialorder %v182, 1.0
  %vm247 = vcmp.eq.f32.partialorder %v183, 1.0
  %vm248 = vcmp.eq.f32.partialorder %v184, 1.0
  %vm249 = vcmp.eq.f32.partialorder %v185, 1.0
  %vm250 = vcmp.eq.f32.partialorder %v186, 1.0
  %vm251 = vcmp.eq.f32.partialorder %v187, 1.0
  %vm252 = vcmp.eq.f32.partialorder %v188, 1.0
  %vm253 = vcmp.eq.f32.partialorder %v189, 1.0
  %vm254 = vcmp.eq.f32.partialorder %v190, 1.0
  %vm255 = vcmp.eq.f32.partialorder %v191, 1.0
  %vm256 = vcmp.eq.f32.partialorder %v192, 1.0
  %vm257 = vcmp.eq.f32.partialorder %v193, 1.0
  %vm258 = vcmp.eq.f32.partialorder %v194, 1.0
  %vm259 = vcmp.eq.f32.partialorder %v195, 1.0
  %vm260 = vcmp.eq.f32.partialorder %v196, 1.0
  %vm261 = vcmp.eq.f32.partialorder %v197, 1.0
  %vm262 = vcmp.eq.f32.partialorder %v198, 1.0
  %vm263 = vcmp.eq.f32.partialorder %v199, 1.0
  %vm264 = vcmp.eq.f32.partialorder %v200, 1.0
  %vm265 = vcmp.eq.f32.partialorder %v201, 1.0
  %vm266 = vcmp.eq.f32.partialorder %v202, 1.0
  %vm267 = vcmp.eq.f32.partialorder %v203, 1.0
  %vm268 = vcmp.eq.f32.partialorder %v204, 1.0
  %vm269 = vcmp.eq.f32.partialorder %v205, 1.0
  %vm270 = vcmp.eq.f32.partialorder %v206, 1.0
  %vm271 = vcmp.eq.f32.partialorder %v207, 1.0
  %vm272 = vcmp.eq.f32.partialorder %v208, 1.0
  %vm273 = vcmp.eq.f32.partialorder %v209, 1.0
  %vm274 = vcmp.eq.f32.partialorder %v210, 1.0
  %vm275 = vcmp.eq.f32.partialorder %v211, 1.0
  %vm276 = vcmp.eq.f32.partialorder %v212, 1.0
  %v277 = vsub.f32 1.0, %v149
  %v278 = vsub.f32 1.0, %v150
  %v279 = vsub.f32 1.0, %v151
  %v280 = vsub.f32 1.0, %v152
  %v281 = vsub.f32 1.0, %v153
  %v282 = vsub.f32 1.0, %v154
  %v283 = vsub.f32 1.0, %v155
  %v284 = vsub.f32 1.0, %v156
  %v285 = vsub.f32 1.0, %v157
  %v286 = vsub.f32 1.0, %v158
  %v287 = vsub.f32 1.0, %v159
  %v288 = vsub.f32 1.0, %v160
  %v289 = vsub.f32 1.0, %v161
  %v290 = vsub.f32 1.0, %v162
  %v291 = vsub.f32 1.0, %v163
  %v292 = vsub.f32 1.0, %v164
  %v293 = vsub.f32 1.0, %v165
  %v294 = vsub.f32 1.0, %v166
  %v295 = vsub.f32 1.0, %v167
  %v296 = vsub.f32 1.0, %v168
  %v297 = vsub.f32 1.0, %v169
  %v298 = vsub.f32 1.0, %v170
  %v299 = vsub.f32 1.0, %v171
  %v300 = vsub.f32 1.0, %v172
  %v301 = vsub.f32 1.0, %v173
  %v302 = vsub.f32 1.0, %v174
  %v303 = vsub.f32 1.0, %v175
  %v304 = vsub.f32 1.0, %v176
  %v305 = vsub.f32 1.0, %v177
  %v306 = vsub.f32 1.0, %v178
  %v307 = vsub.f32 1.0, %v179
  %v308 = vsub.f32 1.0, %v180
  %v309 = vsel %vm245, %v149, %v277
  %v310 = vsel %vm246, %v150, %v278
  %v311 = vsel %vm247, %v151, %v279
  %v312 = vsel %vm248, %v152, %v280
  %v313 = vsel %vm249, %v153, %v281
  %v314 = vsel %vm250, %v154, %v282
  %v315 = vsel %vm251, %v155, %v283
  %v316 = vsel %vm252, %v156, %v284
  %v317 = vsel %vm253, %v157, %v285
  %v318 = vsel %vm254, %v158, %v286
  %v319 = vsel %vm255, %v159, %v287
  %v320 = vsel %vm256, %v160, %v288
  %v321 = vsel %vm257, %v161, %v289
  %v322 = vsel %vm258, %v162, %v290
  %v323 = vsel %vm259, %v163, %v291
  %v324 = vsel %vm260, %v164, %v292
  %v325 = vsel %vm261, %v165, %v293
  %v326 = vsel %vm262, %v166, %v294
  %v327 = vsel %vm263, %v167, %v295
  %v328 = vsel %vm264, %v168, %v296
  %v329 = vsel %vm265, %v169, %v297
  %v330 = vsel %vm266, %v170, %v298
  %v331 = vsel %vm267, %v171, %v299
  %v332 = vsel %vm268, %v172, %v300
  %v333 = vsel %vm269, %v173, %v301
  %v334 = vsel %vm270, %v174, %v302
  %v335 = vsel %vm271, %v175, %v303
  %v336 = vsel %vm272, %v176, %v304
  %v337 = vsel %vm273, %v177, %v305
  %v338 = vsel %vm274, %v178, %v306
  %v339 = vsel %vm275, %v179, %v307
  %v340 = vsel %vm276, %v180, %v308
  %v341 = vlog2.pop %v309
  %v342 = vmul.f32 %v341, 0.6931472
  %v343 = vlog2.pop %v310
  %v344 = vmul.f32 %v343, 0.6931472
  %v345 = vlog2.pop %v311
  %v346 = vmul.f32 %v345, 0.6931472
  %v347 = vlog2.pop %v312
  %v348 = vmul.f32 %v347, 0.6931472
  %v349 = vlog2.pop %v313
  %v350 = vmul.f32 %v349, 0.6931472
  %v351 = vlog2.pop %v314
  %v352 = vmul.f32 %v351, 0.6931472
  %v353 = vlog2.pop %v315
  %v354 = vmul.f32 %v353, 0.6931472
  %v355 = vlog2.pop %v316
  %v356 = vmul.f32 %v355, 0.6931472
  %v357 = vlog2.pop %v317
  %v358 = vmul.f32 %v357, 0.6931472
  %v359 = vlog2.pop %v318
  %v360 = vmul.f32 %v359, 0.6931472
  %v361 = vlog2.pop %v319
  %v362 = vmul.f32 %v361, 0.6931472
  %v363 = vlog2.pop %v320
  %v364 = vmul.f32 %v363, 0.6931472
  %v365 = vlog2.pop %v321
  %v366 = vmul.f32 %v365, 0.6931472
  %v367 = vlog2.pop %v322
  %v368 = vmul.f32 %v367, 0.6931472
  %v369 = vlog2.pop %v323
  %v370 = vmul.f32 %v369, 0.6931472
  %v371 = vlog2.pop %v324
  %v372 = vmul.f32 %v371, 0.6931472
  %v373 = vlog2.pop %v325
  %v374 = vmul.f32 %v373, 0.6931472
  %v375 = vlog2.pop %v326
  %v376 = vmul.f32 %v375, 0.6931472
  %v377 = vlog2.pop %v327
  %v378 = vmul.f32 %v377, 0.6931472
  %v379 = vlog2.pop %v328
  %v380 = vmul.f32 %v379, 0.6931472
  %v381 = vlog2.pop %v329
  %v382 = vmul.f32 %v381, 0.6931472
  %v383 = vlog2.pop %v330
  %v384 = vmul.f32 %v383, 0.6931472
  %v385 = vlog2.pop %v331
  %v386 = vmul.f32 %v385, 0.6931472
  %v387 = vlog2.pop %v332
  %v388 = vmul.f32 %v387, 0.6931472
  %v389 = vlog2.pop %v333
  %v390 = vmul.f32 %v389, 0.6931472
  %v391 = vlog2.pop %v334
  %v392 = vmul.f32 %v391, 0.6931472
  %v393 = vlog2.pop %v335
  %v394 = vmul.f32 %v393, 0.6931472
  %v395 = vlog2.pop %v336
  %v396 = vmul.f32 %v395, 0.6931472
  %v397 = vlog2.pop %v337
  %v398 = vmul.f32 %v397, 0.6931472
  %v399 = vlog2.pop %v338
  %v400 = vmul.f32 %v399, 0.6931472
  %v401 = vlog2.pop %v339
  %v402 = vmul.f32 %v401, 0.6931472
  %v403 = vlog2.pop %v340
  %v404 = vmul.f32 %v403, 0.6931472
  %v405 = vsub.f32 1.0, %v181
  %v406 = vsub.f32 1.0, %v182
  %v407 = vsub.f32 1.0, %v183
  %v408 = vsub.f32 1.0, %v184
  %v409 = vsub.f32 1.0, %v185
  %v410 = vsub.f32 1.0, %v186
  %v411 = vsub.f32 1.0, %v187
  %v412 = vsub.f32 1.0, %v188
  %v413 = vsub.f32 1.0, %v189
  %v414 = vsub.f32 1.0, %v190
  %v415 = vsub.f32 1.0, %v191
  %v416 = vsub.f32 1.0, %v192
  %v417 = vsub.f32 1.0, %v193
  %v418 = vsub.f32 1.0, %v194
  %v419 = vsub.f32 1.0, %v195
  %v420 = vsub.f32 1.0, %v196
  %v421 = vsub.f32 1.0, %v197
  %v422 = vsub.f32 1.0, %v198
  %v423 = vsub.f32 1.0, %v199
  %v424 = vsub.f32 1.0, %v200
  %v425 = vsub.f32 1.0, %v201
  %v426 = vsub.f32 1.0, %v202
  %v427 = vsub.f32 1.0, %v203
  %v428 = vsub.f32 1.0, %v204
  %v429 = vsub.f32 1.0, %v205
  %v430 = vsub.f32 1.0, %v206
  %v431 = vsub.f32 1.0, %v207
  %v432 = vsub.f32 1.0, %v208
  %v433 = vsub.f32 1.0, %v209
  %v434 = vsub.f32 1.0, %v210
  %v435 = vsub.f32 1.0, %v211
  %v436 = vsub.f32 1.0, %v212
  %v437 = vmul.f32 %v405, %v405
  %v438 = vmul.f32 %v406, %v406
  %v439 = vmul.f32 %v407, %v407
  %v440 = vmul.f32 %v408, %v408
  %v441 = vmul.f32 %v409, %v409
  %v442 = vmul.f32 %v410, %v410
  %v443 = vmul.f32 %v411, %v411
  %v444 = vmul.f32 %v412, %v412
  %v445 = vmul.f32 %v413, %v413
  %v446 = vmul.f32 %v414, %v414
  %v447 = vmul.f32 %v415, %v415
  %v448 = vmul.f32 %v416, %v416
  %v449 = vmul.f32 %v417, %v417
  %v450 = vmul.f32 %v418, %v418
  %v451 = vmul.f32 %v419, %v419
  %v452 = vmul.f32 %v420, %v420
  %v453 = vmul.f32 %v421, %v421
  %v454 = vmul.f32 %v422, %v422
  %v455 = vmul.f32 %v423, %v423
  %v456 = vmul.f32 %v424, %v424
  %v457 = vmul.f32 %v425, %v425
  %v458 = vmul.f32 %v426, %v426
  %v459 = vmul.f32 %v427, %v427
  %v460 = vmul.f32 %v428, %v428
  %v461 = vmul.f32 %v429, %v429
  %v462 = vmul.f32 %v430, %v430
  %v463 = vmul.f32 %v431, %v431
  %v464 = vmul.f32 %v432, %v432
  %v465 = vmul.f32 %v433, %v433
  %v466 = vmul.f32 %v434, %v434
  %v467 = vmul.f32 %v435, %v435
  %v468 = vmul.f32 %v436, %v436
  %v469 = vmul.f32 %v437, %v437
  %v470 = vmul.f32 %v438, %v438
  %v471 = vmul.f32 %v439, %v439
  %v472 = vmul.f32 %v440, %v440
  %v473 = vmul.f32 %v441, %v441
  %v474 = vmul.f32 %v442, %v442
  %v475 = vmul.f32 %v443, %v443
  %v476 = vmul.f32 %v444, %v444
  %v477 = vmul.f32 %v445, %v445
  %v478 = vmul.f32 %v446, %v446
  %v479 = vmul.f32 %v447, %v447
  %v480 = vmul.f32 %v448, %v448
  %v481 = vmul.f32 %v449, %v449
  %v482 = vmul.f32 %v450, %v450
  %v483 = vmul.f32 %v451, %v451
  %v484 = vmul.f32 %v452, %v452
  %v485 = vmul.f32 %v453, %v453
  %v486 = vmul.f32 %v454, %v454
  %v487 = vmul.f32 %v455, %v455
  %v488 = vmul.f32 %v456, %v456
  %v489 = vmul.f32 %v457, %v457
  %v490 = vmul.f32 %v458, %v458
  %v491 = vmul.f32 %v459, %v459
  %v492 = vmul.f32 %v460, %v460
  %v493 = vmul.f32 %v461, %v461
  %v494 = vmul.f32 %v462, %v462
  %v495 = vmul.f32 %v463, %v463
  %v496 = vmul.f32 %v464, %v464
  %v497 = vmul.f32 %v465, %v465
  %v498 = vmul.f32 %v466, %v466
  %v499 = vmul.f32 %v467, %v467
  %v500 = vmul.f32 %v468, %v468
  %v501 = vsel %vm245, 1.0, %v469
  %v502 = vsel %vm246, 1.0, %v470
  %v503 = vsel %vm247, 1.0, %v471
  %v504 = vsel %vm248, 1.0, %v472
  %v505 = vsel %vm249, 1.0, %v473
  %v506 = vsel %vm250, 1.0, %v474
  %v507 = vsel %vm251, 1.0, %v475
  %v508 = vsel %vm252, 1.0, %v476
  %v509 = vsel %vm253, 1.0, %v477
  %v510 = vsel %vm254, 1.0, %v478
  %v511 = vsel %vm255, 1.0, %v479
  %v512 = vsel %vm256, 1.0, %v480
  %v513 = vsel %vm257, 1.0, %v481
  %v514 = vsel %vm258, 1.0, %v482
  %v515 = vsel %vm259, 1.0, %v483
  %v516 = vsel %vm260, 1.0, %v484
  %v517 = vsel %vm261, 1.0, %v485
  %v518 = vsel %vm262, 1.0, %v486
  %v519 = vsel %vm263, 1.0, %v487
  %v520 = vsel %vm264, 1.0, %v488
  %v521 = vsel %vm265, 1.0, %v489
  %v522 = vsel %vm266, 1.0, %v490
  %v523 = vsel %vm267, 1.0, %v491
  %v524 = vsel %vm268, 1.0, %v492
  %v525 = vsel %vm269, 1.0, %v493
  %v526 = vsel %vm270, 1.0, %v494
  %v527 = vsel %vm271, 1.0, %v495
  %v528 = vsel %vm272, 1.0, %v496
  %v529 = vsel %vm273, 1.0, %v497
  %v530 = vsel %vm274, 1.0, %v498
  %v531 = vsel %vm275, 1.0, %v499
  %v532 = vsel %vm276, 1.0, %v500
  %v533 = vsub.f32 %v149, %v181
  %v534 = vsub.f32 %v150, %v182
  %v535 = vsub.f32 %v151, %v183
  %v536 = vsub.f32 %v152, %v184
  %v537 = vsub.f32 %v153, %v185
  %v538 = vsub.f32 %v154, %v186
  %v539 = vsub.f32 %v155, %v187
  %v540 = vsub.f32 %v156, %v188
  %v541 = vsub.f32 %v157, %v189
  %v542 = vsub.f32 %v158, %v190
  %v543 = vsub.f32 %v159, %v191
  %v544 = vsub.f32 %v160, %v192
  %v545 = vsub.f32 %v161, %v193
  %v546 = vsub.f32 %v162, %v194
  %v547 = vsub.f32 %v163, %v195
  %v548 = vsub.f32 %v164, %v196
  %v549 = vsub.f32 %v165, %v197
  %v550 = vsub.f32 %v166, %v198
  %v551 = vsub.f32 %v167, %v199
  %v552 = vsub.f32 %v168, %v200
  %v553 = vsub.f32 %v169, %v201
  %v554 = vsub.f32 %v170, %v202
  %v555 = vsub.f32 %v171, %v203
  %v556 = vsub.f32 %v172, %v204
  %v557 = vsub.f32 %v173, %v205
  %v558 = vsub.f32 %v174, %v206
  %v559 = vsub.f32 %v175, %v207
  %v560 = vsub.f32 %v176, %v208
  %v561 = vsub.f32 %v177, %v209
  %v562 = vsub.f32 %v178, %v210
  %v563 = vsub.f32 %v179, %v211
  %v564 = vsub.f32 %v180, %v212
  %v565 = vmul.f32 %v533, %v533
  %v566 = vmul.f32 %v534, %v534
  %v567 = vmul.f32 %v535, %v535
  %v568 = vmul.f32 %v536, %v536
  %v569 = vmul.f32 %v537, %v537
  %v570 = vmul.f32 %v538, %v538
  %v571 = vmul.f32 %v539, %v539
  %v572 = vmul.f32 %v540, %v540
  %v573 = vmul.f32 %v541, %v541
  %v574 = vmul.f32 %v542, %v542
  %v575 = vmul.f32 %v543, %v543
  %v576 = vmul.f32 %v544, %v544
  %v577 = vmul.f32 %v545, %v545
  %v578 = vmul.f32 %v546, %v546
  %v579 = vmul.f32 %v547, %v547
  %v580 = vmul.f32 %v548, %v548
  %v581 = vmul.f32 %v549, %v549
  %v582 = vmul.f32 %v550, %v550
  %v583 = vmul.f32 %v551, %v551
  %v584 = vmul.f32 %v552, %v552
  %v585 = vmul.f32 %v553, %v553
  %v586 = vmul.f32 %v554, %v554
  %v587 = vmul.f32 %v555, %v555
  %v588 = vmul.f32 %v556, %v556
  %v589 = vmul.f32 %v557, %v557
  %v590 = vmul.f32 %v558, %v558
  %v591 = vmul.f32 %v559, %v559
  %v592 = vmul.f32 %v560, %v560
  %v593 = vmul.f32 %v561, %v561
  %v594 = vmul.f32 %v562, %v562
  %v595 = vmul.f32 %v563, %v563
  %v596 = vmul.f32 %v564, %v564
  %v597 = vmul.f32 %v213, %v565
  %v598 = vmul.f32 %v214, %v566
  %v599 = vmul.f32 %v215, %v567
  %v600 = vmul.f32 %v216, %v568
  %v601 = vmul.f32 %v217, %v569
  %v602 = vmul.f32 %v218, %v570
  %v603 = vmul.f32 %v219, %v571
  %v604 = vmul.f32 %v220, %v572
  %v605 = vmul.f32 %v221, %v573
  %v606 = vmul.f32 %v222, %v574
  %v607 = vmul.f32 %v223, %v575
  %v608 = vmul.f32 %v224, %v576
  %v609 = vmul.f32 %v225, %v577
  %v610 = vmul.f32 %v226, %v578
  %v611 = vmul.f32 %v227, %v579
  %v612 = vmul.f32 %v228, %v580
  %v613 = vmul.f32 %v229, %v581
  %v614 = vmul.f32 %v230, %v582
  %v615 = vmul.f32 %v231, %v583
  %v616 = vmul.f32 %v232, %v584
  %v617 = vmul.f32 %v233, %v585
  %v618 = vmul.f32 %v234, %v586
  %v619 = vmul.f32 %v235, %v587
  %v620 = vmul.f32 %v236, %v588
  %v621 = vmul.f32 %v237, %v589
  %v622 = vmul.f32 %v238, %v590
  %v623 = vmul.f32 %v239, %v591
  %v624 = vmul.f32 %v240, %v592
  %v625 = vmul.f32 %v241, %v593
  %v626 = vmul.f32 %v242, %v594
  %v627 = vmul.f32 %v243, %v595
  %v628 = vmul.f32 %v244, %v596
  %v629 = vmul.f32 %v501, %v342
  %v630 = vmul.f32 %v502, %v344
  %v631 = vmul.f32 %v503, %v346
  %v632 = vmul.f32 %v504, %v348
  %v633 = vmul.f32 %v505, %v350
  %v634 = vmul.f32 %v506, %v352
  %v635 = vmul.f32 %v507, %v354
  %v636 = vmul.f32 %v508, %v356
  %v637 = vmul.f32 %v509, %v358
  %v638 = vmul.f32 %v510, %v360
  %v639 = vmul.f32 %v511, %v362
  %v640 = vmul.f32 %v512, %v364
  %v641 = vmul.f32 %v513, %v366
  %v642 = vmul.f32 %v514, %v368
  %v643 = vmul.f32 %v515, %v370
  %v644 = vmul.f32 %v516, %v372
  %v645 = vmul.f32 %v517, %v374
  %v646 = vmul.f32 %v518, %v376
  %v647 = vmul.f32 %v519, %v378
  %v648 = vmul.f32 %v520, %v380
  %v649 = vmul.f32 %v521, %v382
  %v650 = vmul.f32 %v522, %v384
  %v651 = vmul.f32 %v523, %v386
  %v652 = vmul.f32 %v524, %v388
  %v653 = vmul.f32 %v525, %v390
  %v654 = vmul.f32 %v526, %v392
  %v655 = vmul.f32 %v527, %v394
  %v656 = vmul.f32 %v528, %v396
  %v657 = vmul.f32 %v529, %v398
  %v658 = vmul.f32 %v530, %v400
  %v659 = vmul.f32 %v531, %v402
  %v660 = vmul.f32 %v532, %v404
  %v661 = vmul.f32 %v597, %v629
  %v662 = vmul.f32 %v598, %v630
  %v663 = vmul.f32 %v599, %v631
  %v664 = vmul.f32 %v600, %v632
  %v665 = vmul.f32 %v601, %v633
  %v666 = vmul.f32 %v602, %v634
  %v667 = vmul.f32 %v603, %v635
  %v668 = vmul.f32 %v604, %v636
  %v669 = vmul.f32 %v605, %v637
  %v670 = vmul.f32 %v606, %v638
  %v671 = vmul.f32 %v607, %v639
  %v672 = vmul.f32 %v608, %v640
  %v673 = vmul.f32 %v609, %v641
  %v674 = vmul.f32 %v610, %v642
  %v675 = vmul.f32 %v611, %v643
  %v676 = vmul.f32 %v612, %v644
  %v677 = vmul.f32 %v613, %v645
  %v678 = vmul.f32 %v614, %v646
  %v679 = vmul.f32 %v615, %v647
  %v680 = vmul.f32 %v616, %v648
  %v681 = vmul.f32 %v617, %v649
  %v682 = vmul.f32 %v618, %v650
  %v683 = vmul.f32 %v619, %v651
  %v684 = vmul.f32 %v620, %v652
  %v685 = vmul.f32 %v621, %v653
  %v686 = vmul.f32 %v622, %v654
  %v687 = vmul.f32 %v623, %v655
  %v688 = vmul.f32 %v624, %v656
  %v689 = vmul.f32 %v625, %v657
  %v690 = vmul.f32 %v626, %v658
  %v691 = vmul.f32 %v627, %v659
  %v692 = vmul.f32 %v628, %v660
  %v693 = vld [vmem:[%s3] sm:$0xff]
  %v694 = vadd.f32 %v661, %v662
  %v695 = vadd.f32 %v694, %v663
  %v696 = vadd.f32 %v695, %v664
  %v697 = vadd.f32 %v696, %v665
  %v698 = vadd.f32 %v697, %v666
  %v699 = vadd.f32 %v698, %v667
  %v700 = vadd.f32 %v699, %v668
  %v701 = vadd.f32 %v700, %v669
  %v702 = vadd.f32 %v701, %v670
  %v703 = vadd.f32 %v702, %v671
  %v704 = vadd.f32 %v703, %v672
  %v705 = vadd.f32 %v704, %v673
  %v706 = vadd.f32 %v705, %v674
  %v707 = vadd.f32 %v706, %v675
  %v708 = vadd.f32 %v707, %v676
  %v709 = vadd.f32 %v708, %v677
  %v710 = vadd.f32 %v709, %v678
  %v711 = vadd.f32 %v710, %v679
  %v712 = vadd.f32 %v711, %v680
  %v713 = vadd.f32 %v712, %v681
  %v714 = vadd.f32 %v713, %v682
  %v715 = vadd.f32 %v714, %v683
  %v716 = vadd.f32 %v715, %v684
  %v717 = vadd.f32 %v716, %v685
  %v718 = vadd.f32 %v717, %v686
  %v719 = vadd.f32 %v718, %v687
  %v720 = vadd.f32 %v719, %v688
  %v721 = vadd.f32 %v720, %v689
  %v722 = vadd.f32 %v721, %v690
  %v723 = vadd.f32 %v722, %v691
  %v724 = vadd.f32 %v723, %v692
  %v725 = vadd.f32 %v693, %v724
  %726 = vst [vmem:[%s3] sm:$0xff] %v725
  // Predicated region
  $region18: #{pixel_focal_loss.1} parent=0 // pred_check
    _
  $region19: #{pixel_focal_loss.1} parent=0 // pred_check_branch
    %728 = sbr.rel (0) target = $region21
  $region20: #{pixel_focal_loss.1} parent=0 // pred_region
    _
  $region21: #{pixel_focal_loss.1} parent=0 // pred_fallthru
    _
  // Predicated region
  $region22: #{pixel_focal_loss.1} parent=0 // pred_check
    _
  $region23: #{pixel_focal_loss.1} parent=0 // pred_check_branch
    %730 = sbr.rel (0) target = $region25
  $region24: #{pixel_focal_loss.1} parent=0 // pred_region
    _
  $region25: #{pixel_focal_loss.1} parent=0 // pred_fallthru
    _

</llo_original>
